<compile_context>
chip_gen: v7x
topology: tpu7x:2x2x1
jax: 0.10.0
libtpu: 0.0.40
codegen_flags: <defaults>
</compile_context>

<pallas_src>
import functools

import jax
import jax.numpy as jnp
from jax import lax
from jax.experimental import pallas as pl
from jax.experimental.pallas import tpu as pltpu

LANE = 128
SUBLANE = 8
MAX_TILE_ROWS = 4096  # 2 MiB per f32 input block; ~8 MiB double-buffered for 2 inputs


def _l2_partial_kernel(x_ref, t_ref, o_ref, *, rows, tile_r, need_mask):
    # squared difference, f32 accumulation (native-dtype inputs, cast on VPU)
    d = x_ref[...].astype(jnp.float32) - t_ref[...].astype(jnp.float32)
    sq = d * d
    if need_mask:
        # zero out rows past the valid extent (ragged last block)
        row_start = pl.program_id(0) * tile_r
        row_ids = row_start + lax.broadcasted_iota(jnp.int32, sq.shape, 0)
        sq = jnp.where(row_ids < rows, sq, 0.0)
    # reduce (tile_r, 128) -> (8, 128) with pure vreg-wise VPU adds
    o_ref[0] = sq.reshape(tile_r // SUBLANE, SUBLANE, LANE).sum(axis=0)


def _sum_sq_pallas(x2, t2, rows, tile_r):
    nblocks = pl.cdiv(rows, tile_r)
    kernel = functools.partial(
        _l2_partial_kernel,
        rows=rows,
        tile_r=tile_r,
        need_mask=(rows % tile_r) != 0,
    )
    partials = pl.pallas_call(
        kernel,
        out_shape=jax.ShapeDtypeStruct((nblocks, SUBLANE, LANE), jnp.float32),
        grid_spec=pltpu.PrefetchScalarGridSpec(
            num_scalar_prefetch=0,
            grid=(nblocks,),
            in_specs=[
                pl.BlockSpec((tile_r, LANE), lambda i: (i, 0)),
                pl.BlockSpec((tile_r, LANE), lambda i: (i, 0)),
            ],
            out_specs=pl.BlockSpec((1, SUBLANE, LANE), lambda i: (i, 0, 0)),
        ),
        compiler_params=pltpu.CompilerParams(
            # independent per-block partials -> megacore sharding on v7x
            dimension_semantics=("parallel",),
        ),
    )(x2, t2)
    return jnp.sum(partials)


@functools.partial(jax.jit, static_argnames=("weight",))
def l2_loss(x, target, weight=None):
    assert x.shape == target.shape, "input/target shapes must match"

    xf = x.reshape(-1)
    tf = target.reshape(-1)
    n = xf.shape[0]

    main = (n // LANE) * LANE
    rows = main // LANE

    # tiny ragged tail (< 128 elements): plain JAX, added before the sqrt
    tail_sq = None
    if main != n:
        dt = xf[main:].astype(jnp.float32) - tf[main:].astype(jnp.float32)
        tail_sq = jnp.sum(dt * dt)

    if rows > 0:
        # sublane tile multiple appropriate for the dtype packing
        itemsize = min(jnp.dtype(x.dtype).itemsize, jnp.dtype(target.dtype).itemsize)
        sub_mult = SUBLANE * max(1, 4 // itemsize)  # 8 f32 / 16 bf16 / 32 int8
        rows_up = ((rows + sub_mult - 1) // sub_mult) * sub_mult
        tile_r = min(MAX_TILE_ROWS, rows_up)

        if main == n:
            x2 = xf.reshape(rows, LANE)  # free reshape, no HBM copy
            t2 = tf.reshape(rows, LANE)
        else:
            x2 = xf[:main].reshape(rows, LANE)
            t2 = tf[:main].reshape(rows, LANE)

        total = _sum_sq_pallas(x2, t2, rows, tile_r)
        if tail_sq is not None:
            total = total + tail_sq
    else:
        total = tail_sq if tail_sq is not None else jnp.float32(0.0)

    loss = jnp.sqrt(total)
    if weight is not None:
        loss = weight * loss
    return loss


if __name__ == "__main__":
    key = jax.random.PRNGKey(0)
    kx, kt = jax.random.split(key)

    # NCHW-shaped inputs consistent with the module's usage
    shape = (2, 4, 16, 16)
    x = jax.random.normal(kx, shape, dtype=jnp.float32)
    t = jax.random.normal(kt, shape, dtype=jnp.float32)

    loss = l2_loss(x, t)  # weight=None, matching L2Loss() default
    jax.block_until_ready(loss)
    ref = jnp.sqrt(jnp.sum((x - t) ** 2))
    assert jnp.allclose(loss, ref, rtol=1e-5, atol=1e-5), (loss, ref)

    # optional-weight path
    loss_w = l2_loss(x, t, weight=0.5)
    jax.block_until_ready(loss_w)
    assert jnp.allclose(loss_w, 0.5 * ref, rtol=1e-5, atol=1e-5), (loss_w, ref)

    # awkward size (not a multiple of 128, rows not a multiple of 8):
    # exercises the in-kernel row mask and the plain-JAX tail path
    shape2 = (3, 5, 7, 11)
    xa = jax.random.normal(kx, shape2, dtype=jnp.float32)
    ta = jax.random.normal(kt, shape2, dtype=jnp.float32)
    loss2 = l2_loss(xa, ta)
    jax.block_until_ready(loss2)
    ref2 = jnp.sqrt(jnp.sum((xa - ta) ** 2))
    assert jnp.allclose(loss2, ref2, rtol=1e-5, atol=1e-5), (loss2, ref2)

    print("KERNEL_OK")
</pallas_src>

<mosaic_0001>
module attributes {stable_mosaic.version = 11 : i64} {
  func.func @_l2_partial_kernel(%arg0: i32, %arg1: memref<16x128xf32, #tpu.memory_space<vmem>>, %arg2: memref<16x128xf32, #tpu.memory_space<vmem>>, %arg3: memref<1x8x128xf32, #tpu.memory_space<vmem>>) attributes {dimension_semantics = [#tpu.dimension_semantics<parallel>], iteration_bounds = array<i64: 1>, scalar_prefetch = 0 : i64, scratch_operands = 0 : i64, tpu.core_type = #tpu.core_type<tc>, window_params = [{transform_indices = @transform_0, window_bounds = array<i64: 16, 128>}, {transform_indices = @transform_1, window_bounds = array<i64: 16, 128>}, {transform_indices = @transform_2, window_bounds = array<i64: 1, 8, 128>}]} {
    %c0 = arith.constant 0 : index
    %c0_0 = arith.constant 0 : index
    %0 = vector.load %arg1[%c0, %c0_0] : memref<16x128xf32, #tpu.memory_space<vmem>>, vector<16x128xf32>
    %c0_1 = arith.constant 0 : index
    %c0_2 = arith.constant 0 : index
    %1 = vector.load %arg2[%c0_1, %c0_2] : memref<16x128xf32, #tpu.memory_space<vmem>>, vector<16x128xf32>
    %2 = arith.subf %0, %1 : vector<16x128xf32>
    %3 = arith.mulf %2, %2 : vector<16x128xf32>
    %4 = vector.shape_cast %3 : vector<16x128xf32> to vector<2x8x128xf32>
    %cst = arith.constant dense<0.000000e+00> : vector<8x128xf32>
    %5 = vector.multi_reduction <add>, %4, %cst [0] : vector<2x8x128xf32> to vector<8x128xf32>
    %c0_3 = arith.constant 0 : index
    %c0_4 = arith.constant 0 : index
    %c0_5 = arith.constant 0 : index
    %6 = vector.load %arg3[%c0_3, %c0_4, %c0_5] : memref<1x8x128xf32, #tpu.memory_space<vmem>>, vector<1x8x128xf32>
    %7 = vector.shape_cast %6 : vector<1x8x128xf32> to vector<8x128xf32>
    %8 = vector.shape_cast %5 : vector<8x128xf32> to vector<1x8x128xf32>
    tpu.vector_store %arg3[%c0_3, %c0_4, %c0_5], %8 {strides = array<i32>} : memref<1x8x128xf32, #tpu.memory_space<vmem>>, vector<1x8x128xf32>,
    return
  }
  func.func @transform_0(%arg0: i32) -> (i32, i32) {
    %c0_i32 = arith.constant 0 : i32
    %c0_i32_0 = arith.constant 0 : i32
    return %arg0, %c0_i32 : i32, i32
  }
  func.func @transform_1(%arg0: i32) -> (i32, i32) {
    %c0_i32 = arith.constant 0 : i32
    %c0_i32_0 = arith.constant 0 : i32
    return %arg0, %c0_i32 : i32, i32
  }
  func.func @transform_2(%arg0: i32) -> (i32, i32, i32) {
    %c0_i32 = arith.constant 0 : i32
    %c0_i32_0 = arith.constant 0 : i32
    %c0_i32_1 = arith.constant 0 : i32
    return %arg0, %c0_i32, %c0_i32_0 : i32, i32, i32
  }
}

</mosaic_0001>

<llo_original>
// kernel: l2_loss.1
$region0: #{l2_loss.1}
  #allocation0 [shape = 'u32[]', space=smem, size = 0x4, offset = 0x4, fixed_abs, tag = 'smem constant byte address 0x4 - core index']
  #allocation1 [shape = 'u32[144,128]{1,0:T(1,128)}', space=vmem, size = 0x12000, scoped, tag = 'internal scratch']
  %s0 = inlined_call_operand.vmem [shape: f32[16,128], index: 0, kind: input, shape index: {}]
  %s1 = inlined_call_operand.vmem [shape: f32[16,128], index: 1, kind: input, shape index: {}]
  %s2 = inlined_call_operand.vmem [shape: f32[1,8,128], index: 2, kind: output, shape index: {}]
  %s3 = sld [smem:[#allocation0]]
  $region18: #{l2_loss.1} parent=0
    _
  %s5 = ssub.s32 1, %s3
  %s6 = scalar_select 0, %s5, %s3
  // Predicated region
  $region2: #{l2_loss.1} parent=0 // pred_check
    _
  $region3: #{l2_loss.1} parent=0 // pred_check_branch
    %8 = sbr.rel (0) target = $region5
  $region4: #{l2_loss.1} parent=0 // pred_region
    _
  $region5: #{l2_loss.1} parent=0 // pred_fallthru
    _
  // Predicated region
  $region6: #{l2_loss.1} parent=0 // pred_check
    _
  $region7: #{l2_loss.1} parent=0 // pred_check_branch
    %10 = sbr.rel (0) target = $region9
  $region8: #{l2_loss.1} parent=0 // pred_region
    _
  $region9: #{l2_loss.1} parent=0 // pred_fallthru
    _
  %v11 = vld [vmem:[%s0] sm:$0xff]
  %v12 = vld [vmem:[%s0 + $0x8] sm:$0xff]
  %v13 = vld [vmem:[%s1] sm:$0xff]
  %v14 = vld [vmem:[%s1 + $0x8] sm:$0xff]
  %v15 = vsub.f32 %v11, %v13
  %v16 = vsub.f32 %v12, %v14
  %v17 = vmul.f32 %v15, %v15
  %v18 = vmul.f32 %v16, %v16
  %v19 = vadd.f32 %v17, %v18
  %20 = vst [vmem:[%s2] sm:$0xff] %v19
  // Predicated region
  $region10: #{l2_loss.1} parent=0 // pred_check
    _
  $region11: #{l2_loss.1} parent=0 // pred_check_branch
    %22 = sbr.rel (0) target = $region13
  $region12: #{l2_loss.1} parent=0 // pred_region
    _
  $region13: #{l2_loss.1} parent=0 // pred_fallthru
    _
  // Predicated region
  $region14: #{l2_loss.1} parent=0 // pred_check
    _
  $region15: #{l2_loss.1} parent=0 // pred_check_branch
    %24 = sbr.rel (0) target = $region17
  $region16: #{l2_loss.1} parent=0 // pred_region
    _
  $region17: #{l2_loss.1} parent=0 // pred_fallthru
    _

</llo_original>
